<compile_context>
chip_gen: v7x
topology: tpu7x:2x2x1
jax: 0.10.0
libtpu: 0.0.40
codegen_flags: <defaults>
</compile_context>

<pallas_src>
import jax
import jax.numpy as jnp
from jax.experimental import pallas as pl
from jax.experimental.pallas import tpu as pltpu

LN_EPS = 1e-5  # torch.nn.LayerNorm default


def _round_up(x, m):
    return ((x + m - 1) // m) * m


def _vmem_budget_bytes():
    """Generation-aware VMEM budget (v7x: 64 MiB/TC, v5e/v6e: 128 MiB)."""
    phys = 64 * 1024 * 1024  # conservative default (covers v7x)
    try:
        cap = getattr(pltpu.get_tpu_info(), "vmem_capacity_bytes", None)
        if cap:
            phys = int(cap)
    except Exception:
        pass
    budget = (phys * 3) // 4
    return max(32 * 1024 * 1024, min(budget, 96 * 1024 * 1024))


def bert_tagger_forward(hidden_states, cls_w, cls_b, *, tm=2048):
    """hidden_states: [B, S, H] (f32 or bf16, stand-in for last_bert_layer).

    Returns [B, S, num_labels] f32 logits (logit_samples[0] of the PyTorch forward).
    """
    B, S, H = hidden_states.shape
    L = cls_w.shape[1]
    BS = B * S

    # Lane-dense padded label dim (>=128, multiple of 128); padded W columns are zero.
    Lpad = max(128, _round_up(L, 128))

    # Keep x in its native dtype: no wrapper astype/pad copies; bf16 upstream halves HBM reads.
    x2 = hidden_states.reshape(BS, H)
    x_bytes = jnp.dtype(x2.dtype).itemsize
    w_pad = jnp.zeros((H, Lpad), jnp.bfloat16).at[:, :L].set(cls_w.astype(jnp.bfloat16))
    b_f32 = cls_b.astype(jnp.float32)

    # --- Row-tile selection (VMEM-budget aware, >=2 tiles for megacore) -----------------
    budget = _vmem_budget_bytes()
    fixed = 2 * H * Lpad * 2 + 2 * 8 * 128 * 4 + (2 << 20)   # W (dbl-buf, bf16) + partials + slack
    per_row = 2 * (H * x_bytes + Lpad * 4)                   # dbl-buffered x block + f32 out block
    tm_vmem = max(8, ((budget - fixed) // per_row) // 8 * 8)
    tm_half = _round_up(max(pl.cdiv(BS, 2), 1), 8)           # ensure both v7x TCs get work
    tm = max(8, min(_round_up(tm, 8), tm_vmem, tm_half))
    num_tiles = pl.cdiv(BS, tm)
    ragged = (BS % tm) != 0

    def kernel(x_ref, w_ref, acc_ref, part_ref):
        x = x_ref[...]                                       # (tm, H) native dtype
        # MXU matmul in bf16 with f32 accumulation; lane-dense padded N=128.
        acc_ref[...] = jnp.dot(x.astype(jnp.bfloat16), w_ref[...],
                               preferred_element_type=jnp.float32)

        # Per-tile shifted LayerNorm statistics in f32 (numerically robust combine later).
        xf = x.astype(jnp.float32)
        if ragged:
            base = pl.program_id(0) * tm
            rows = base + jax.lax.broadcasted_iota(jnp.int32, (tm, 1), 0)
            rmask = rows < BS                                # mask Pallas-padded garbage rows
            xf = jnp.where(rmask, xf, 0.0)
            n = jnp.minimum(tm, BS - base).astype(jnp.float32) * H
        else:
            n = float(tm * H)
        s = jnp.sum(xf)
        d = xf - s / n
        if ragged:
            d = jnp.where(rmask, d, 0.0)
        css = jnp.sum(d * d)
        lane = jax.lax.broadcasted_iota(jnp.int32, part_ref.shape, 1)
        part_ref[...] = jnp.where(lane == 0, s, jnp.where(lane == 1, css, n))

    bytes_accessed = BS * H * x_bytes + H * Lpad * 2 + BS * Lpad * 4 + num_tiles * 8 * 128 * 4
    raw, partials = pl.pallas_call(
        kernel,
        out_shape=(
            jax.ShapeDtypeStruct((BS, Lpad), jnp.float32),           # raw x @ W_pad
            jax.ShapeDtypeStruct((num_tiles * 8, 128), jnp.float32),  # per-tile [s, css, n, ...]
        ),
        grid=(num_tiles,),
        in_specs=[
            pl.BlockSpec((tm, H), lambda i: (i, 0)),
            pl.BlockSpec((H, Lpad), lambda i: (0, 0)),
        ],
        out_specs=(
            pl.BlockSpec((tm, Lpad), lambda i: (i, 0)),
            pl.BlockSpec((8, 128), lambda i: (i, 0)),
        ),
        compiler_params=pltpu.CompilerParams(
            dimension_semantics=("parallel",),
            vmem_limit_bytes=int(budget),
        ),
        cost_estimate=pl.CostEstimate(
            flops=2 * BS * H * Lpad,
            transcendentals=0,
            bytes_accessed=int(bytes_accessed),
        ),
    )(x2, w_pad)

    # Finalize: combine per-tile shifted stats (Chan parallel variance), apply the global
    # LayerNorm as an affine correction on the tiny [BS, L] matmul result.
    parts = partials.reshape(num_tiles, 8, 128)
    s_t = parts[:, 0, 0]
    css_t = parts[:, 0, 1]
    n_t = parts[:, 0, 2]
    N = float(BS * H)
    mean = jnp.sum(s_t) / N
    m_t = s_t / n_t
    var = (jnp.sum(css_t) + jnp.sum(n_t * (m_t - mean) ** 2)) / N   # biased, matches torch LN
    inv_std = jax.lax.rsqrt(var + LN_EPS)
    col_sum = jnp.sum(w_pad[:, :L].astype(jnp.float32), axis=0)     # (L,), consistent with bf16 W
    logits = inv_std * raw[:, :L] + (b_f32 - inv_std * mean * col_sum)
    return logits.reshape(B, S, L)


def reference_forward(hidden_states, cls_w, cls_b):
    """Pure-JAX f32 reference of the same inference path (for correctness checking)."""
    x = hidden_states.astype(jnp.float32)
    mean = jnp.mean(x)
    var = jnp.mean((x - mean) ** 2)
    xn = (x - mean) / jnp.sqrt(var + LN_EPS)
    return jnp.einsum("bsh,hl->bsl", xn, cls_w.astype(jnp.float32)) + cls_b.astype(jnp.float32)


if __name__ == "__main__":
    # Small, module-consistent shapes: batch=2, seq=8, hidden=32, num_labels=4.
    B, S, H, L, VOCAB = 2, 8, 32, 4, 50

    key = jax.random.PRNGKey(0)
    k_ids, k_emb, k_w, k_b = jax.random.split(key, 4)

    # Glue (stands in for the BERT encoder output): deterministic embedding lookup.
    input_ids = jax.random.randint(k_ids, (B, S), 0, VOCAB)
    emb_table = jax.random.normal(k_emb, (VOCAB, H), dtype=jnp.float32)
    last_bert_layer = emb_table[input_ids]                    # [B, S, H]

    # Deterministic classifier parameters (SingleLinearClassifier == Linear(H, num_labels)).
    cls_w = jax.random.normal(k_w, (H, L), dtype=jnp.float32) * 0.05
    cls_b = jax.random.normal(k_b, (L,), dtype=jnp.float32) * 0.01

    out = bert_tagger_forward(last_bert_layer, cls_w, cls_b)
    out = jax.block_until_ready(out)

    ref = reference_forward(last_bert_layer, cls_w, cls_b)
    assert out.shape == (B, S, L)
    # bf16 MXU operands (v5e MXU win / halved x-read when fed bf16) => bf16-level tolerance.
    assert jnp.allclose(out, ref, atol=5e-3, rtol=5e-3), "Pallas output mismatch vs reference"

    print("KERNEL_OK")
</pallas_src>

<mosaic_0001>
module attributes {stable_mosaic.version = 11 : i64} {
  func.func @kernel(%arg0: i32, %arg1: memref<8x32xf32, #tpu.memory_space<vmem>>, %arg2: memref<32x128xbf16, #tpu.memory_space<vmem>>, %arg3: memref<8x128xf32, #tpu.memory_space<vmem>>, %arg4: memref<8x128xf32, #tpu.memory_space<vmem>>) attributes {dimension_semantics = [#tpu.dimension_semantics<parallel>], iteration_bounds = array<i64: 2>, scalar_prefetch = 0 : i64, scratch_operands = 0 : i64, tpu.core_type = #tpu.core_type<tc>, window_params = [{transform_indices = @transform_0, window_bounds = array<i64: 8, 32>}, {pipeline_mode = #tpu.pipeline_mode<synchronous>, transform_indices = @transform_1, window_bounds = array<i64: 32, 128>}, {transform_indices = @transform_2, window_bounds = array<i64: 8, 128>}, {transform_indices = @transform_3, window_bounds = array<i64: 8, 128>}]} {
    %c0 = arith.constant 0 : index
    %c0_0 = arith.constant 0 : index
    %0 = vector.load %arg1[%c0, %c0_0] : memref<8x32xf32, #tpu.memory_space<vmem>>, vector<8x32xf32>
    %1 = arith.truncf %0 : vector<8x32xf32> to vector<8x32xbf16>
    %c0_1 = arith.constant 0 : index
    %c0_2 = arith.constant 0 : index
    %2 = vector.load %arg2[%c0_1, %c0_2] : memref<32x128xbf16, #tpu.memory_space<vmem>>, vector<32x128xbf16>
    %cst = arith.constant dense<0.000000e+00> : vector<8x128xf32>
    %3 = tpu.matmul %1, %2, %cst {dimension_numbers = #tpu.dot_dimension_numbers<[1], [0], [0], [1], [0, 0, 1, 1], [], []>} : vector<8x32xbf16>, vector<32x128xbf16>, vector<8x128xf32> -> vector<8x128xf32>
    %c0_3 = arith.constant 0 : index
    %c0_4 = arith.constant 0 : index
    %4 = vector.load %arg3[%c0_3, %c0_4] : memref<8x128xf32, #tpu.memory_space<vmem>>, vector<8x128xf32>
    tpu.vector_store %arg3[%c0_3, %c0_4], %3 {strides = array<i32>} : memref<8x128xf32, #tpu.memory_space<vmem>>, vector<8x128xf32>,
    %5 = vector.shape_cast %0 : vector<8x32xf32> to vector<1x8x32xf32>
    %cst_5 = arith.constant dense<0.000000e+00> : vector<1xf32>
    %6 = vector.multi_reduction <add>, %5, %cst_5 [1, 2] : vector<1x8x32xf32> to vector<1xf32>
    %7 = vector.shape_cast %6 : vector<1xf32> to vector<1x1x1xf32>
    %8 = vector.extract %7[0, 0, 0] : f32 from vector<1x1x1xf32>
    %cst_6 = arith.constant 2.560000e+02 : f32
    %9 = arith.divf %8, %cst_6 : f32
    %10 = vector.broadcast %9 : f32 to vector<8x32xf32>
    %11 = arith.subf %0, %10 : vector<8x32xf32>
    %12 = arith.mulf %11, %11 : vector<8x32xf32>
    %13 = vector.shape_cast %12 : vector<8x32xf32> to vector<1x8x32xf32>
    %cst_7 = arith.constant dense<0.000000e+00> : vector<1xf32>
    %14 = vector.multi_reduction <add>, %13, %cst_7 [1, 2] : vector<1x8x32xf32> to vector<1xf32>
    %15 = vector.shape_cast %14 : vector<1xf32> to vector<1x1x1xf32>
    %16 = vector.extract %15[0, 0, 0] : f32 from vector<1x1x1xf32>
    %17 = tpu.iota {dimensions = array<i32: 1>} : vector<8x128xi32>
    %c0_i32 = arith.constant 0 : i32
    %18 = vector.broadcast %c0_i32 : i32 to vector<8x128xi32>
    %19 = arith.cmpi eq, %17, %18 : vector<8x128xi32>
    %c1_i32 = arith.constant 1 : i32
    %20 = vector.broadcast %c1_i32 : i32 to vector<8x128xi32>
    %21 = arith.cmpi eq, %17, %20 : vector<8x128xi32>
    %cst_8 = arith.constant 2.560000e+02 : f32
    %22 = vector.broadcast %16 : f32 to vector<8x128xf32>
    %23 = vector.broadcast %cst_8 : f32 to vector<8x128xf32>
    %24 = arith.select %21, %22, %23 : vector<8x128xi1>, vector<8x128xf32>
    %25 = vector.broadcast %8 : f32 to vector<8x128xf32>
    %26 = arith.select %19, %25, %24 : vector<8x128xi1>, vector<8x128xf32>
    %c0_9 = arith.constant 0 : index
    %c0_10 = arith.constant 0 : index
    %27 = vector.load %arg4[%c0_9, %c0_10] : memref<8x128xf32, #tpu.memory_space<vmem>>, vector<8x128xf32>
    tpu.vector_store %arg4[%c0_9, %c0_10], %26 {strides = array<i32>} : memref<8x128xf32, #tpu.memory_space<vmem>>, vector<8x128xf32>,
    return
  }
  func.func @transform_0(%arg0: i32) -> (i32, i32) {
    %c0_i32 = arith.constant 0 : i32
    %c0_i32_0 = arith.constant 0 : i32
    return %arg0, %c0_i32 : i32, i32
  }
  func.func @transform_1(%arg0: i32) -> (i32, i32) {
    %c0_i32 = arith.constant 0 : i32
    %c0_i32_0 = arith.constant 0 : i32
    %c0_i32_1 = arith.constant 0 : i32
    return %c0_i32, %c0_i32_0 : i32, i32
  }
  func.func @transform_2(%arg0: i32) -> (i32, i32) {
    %c0_i32 = arith.constant 0 : i32
    %c0_i32_0 = arith.constant 0 : i32
    return %arg0, %c0_i32 : i32, i32
  }
  func.func @transform_3(%arg0: i32) -> (i32, i32) {
    %c0_i32 = arith.constant 0 : i32
    %c0_i32_0 = arith.constant 0 : i32
    return %arg0, %c0_i32 : i32, i32
  }
}

</mosaic_0001>

<llo_original>
// kernel: tpu_custom_call.1
$region0: #{tpu_custom_call.1}
  #allocation0 [shape = 'u32[]', space=smem, size = 0x4, offset = 0x4, fixed_abs, tag = 'smem constant byte address 0x4 - core index']
  #allocation1 [shape = 'u32[144,128]{1,0:T(1,128)}', space=vmem, size = 0x12000, scoped, tag = 'internal scratch']
  %s0 = inlined_call_operand.hbm [shape: f32[16,32], index: 0, kind: input, shape index: {}]
  %s1 = inlined_call_operand.hbm [shape: bf16[32,128], index: 1, kind: input, shape index: {}]
  %s2 = inlined_call_operand.hbm [shape: f32[16,128], index: 2, kind: output, shape index: {0}]
  %s3 = inlined_call_operand.hbm [shape: f32[16,128], index: 3, kind: output, shape index: {1}]
  %4 = xla_tuple %s2, %s3
  %s5 = sld [smem:[#allocation0]]
  $region57: #{tpu_custom_call.1} parent=0
    _
  %s7 = ssub.s32 1, %s5
  %s8 = scalar_select 0, %s7, %s5
  $region1: #{tpu_custom_call.1} parent=0
    #allocation2 [shape = 'u8[8192]{0}', space=vmem, size = 0x2000, scoped, tag = 'input window, operand 0']
    #allocation3 [shape = 's32[2]{0}', space=sflag, size = 0x8, scoped, tag = 'scoped memory for tpu_custom_call.1']
    #allocation4 [shape = 's32[2]{0}', space=sflag, size = 0x8, scoped, tag = 'scoped memory for tpu_custom_call.1']
    #allocation5 [shape = 'u8[8192]{0}', space=vmem, size = 0x2000, scoped, tag = 'input window, operand 1, single buffered']
    #allocation6 [shape = 's32[1]{0}', space=sflag, size = 0x4, scoped, tag = 'scoped memory for tpu_custom_call.1']
    #allocation7 [shape = 'u8[8192]{0}', space=vmem, size = 0x2000, scoped, tag = 'output window, operand 0']
    #allocation8 [shape = 'u8[8192]{0}', space=vmem, size = 0x2000, scoped, tag = 'output window, operand 1']
    #allocation9 [shape = 's32[2]{0}', space=sflag, size = 0x8, scoped, tag = 'scoped memory for tpu_custom_call.1']
    %9 = vsyncpa [#allocation3], 0
    %s10 = scalar_lea.sflag [#allocation3], 1
    %11 = vsyncpa %s10, 0
    %12 = vsyncpa [#allocation6], 0
    %13 = vsyncpa [#allocation4], 0
    %s14 = scalar_lea.sflag [#allocation4], 1
    %15 = vsyncpa %s14, 0
    %16 = vsyncpa [#allocation9], 0
    %s17 = scalar_lea.sflag [#allocation9], 1
    %18 = vsyncpa %s17, 0
    loop: start=0, step=1, limit=4
    $region2: #{tpu_custom_call.1} parent=1 // loop_pre_header
      _
    $region3: #{tpu_custom_call.1} parent=1 // loop_header
      %s20 = sphi 0, %s24
      %p21 = scmp.ge.s32.totalorder %s20, 4
      %s30 = sphi 0, %s32
      %s33 = sphi 0, %s30
      %s34 = sphi 0, %s33
      %s50 = sphi 0, %s34
      %s54 = sphi 0, %s54
      %s56 = sphi 0, %s54
      %s57 = sphi 0, %s56
      %s71 = sphi 0, %s57
      %s77 = sphi 0, %s79
      %s80 = sphi 0, %s77
      %s81 = sphi 0, %s80
      %s97 = sphi 0, %s81
      %s103 = sphi 0, %s105
      %s106 = sphi 0, %s103
      %s107 = sphi 0, %s106
      %s123 = sphi 0, %s107
    $region4: #{tpu_custom_call.1} parent=1 // loop_header_branch
      %23 = sbr.rel (%p21) target = $region8
    $region5: #{tpu_custom_call.1} parent=1 // loop_body
      %s25 = ssub.s32 %s20, 1
      %s26 = ssub.s32 %s20, 2
      %s27 = sadd.s32 %s20, 1
      %s28 = ssub.s32 %s20, %s27
      %p29 = scmp.eq.s32.totalorder %s28, 0
      %s31 = sadd.s32 %s30, 1
      %s32 = scalar_select %p29, %s30, %s31
      %p35 = pneg %p29
      %p36 = scmp.eq.s32.totalorder %s20, 1
      %p37 = por %p35, %p36
      %p38 = scmp.ne.s32.totalorder %s30, %s33
      %p39 = scmp.eq.s32.totalorder %s20, 0
      %p40 = por %p38, %p39
      %p41 = scmp.ne.s32.totalorder %s30, %s33
      %p42 = scmp.eq.s32.totalorder %s25, 1
      %p43 = por %p41, %p42
      %p44 = scmp.ne.s32.totalorder %s33, %s34
      %p45 = scmp.eq.s32.totalorder %s25, 0
      %p46 = por %p44, %p45
      %p47 = scmp.ne.s32.totalorder %s33, %s34
      %p48 = scmp.eq.s32.totalorder %s26, 1
      %p49 = por %p47, %p48
      %p51 = scmp.ne.s32.totalorder %s34, %s50
      %p52 = scmp.eq.s32.totalorder %s26, 0
      %p53 = por %p51, %p52
      %s55 = sadd.s32 %s54, 1
      %p58 = scmp.eq.s32.totalorder %s20, 1
      %p59 = scmp.ne.s32.totalorder %s54, %s56
      %p60 = scmp.eq.s32.totalorder %s20, 0
      %p61 = por %p59, %p60
      %p62 = scmp.ne.s32.totalorder %s54, %s56
      %p63 = scmp.eq.s32.totalorder %s25, 1
      %p64 = por %p62, %p63
      %p65 = scmp.ne.s32.totalorder %s56, %s57
      %p66 = scmp.eq.s32.totalorder %s25, 0
      %p67 = por %p65, %p66
      %p68 = scmp.ne.s32.totalorder %s56, %s57
      %p69 = scmp.eq.s32.totalorder %s26, 1
      %p70 = por %p68, %p69
      %p72 = scmp.ne.s32.totalorder %s57, %s71
      %p73 = scmp.eq.s32.totalorder %s26, 0
      %p74 = por %p72, %p73
      %s75 = ssub.s32 %s20, %s27
      %p76 = scmp.eq.s32.totalorder %s75, 0
      %s78 = sadd.s32 %s77, 1
      %s79 = scalar_select %p76, %s77, %s78
      %p82 = pneg %p76
      %p83 = scmp.eq.s32.totalorder %s20, 1
      %p84 = por %p82, %p83
      %p85 = scmp.ne.s32.totalorder %s77, %s80
      %p86 = scmp.eq.s32.totalorder %s20, 0
      %p87 = por %p85, %p86
      %p88 = scmp.ne.s32.totalorder %s77, %s80
      %p89 = scmp.eq.s32.totalorder %s25, 1
      %p90 = por %p88, %p89
      %p91 = scmp.ne.s32.totalorder %s80, %s81
      %p92 = scmp.eq.s32.totalorder %s25, 0
      %p93 = por %p91, %p92
      %p94 = scmp.ne.s32.totalorder %s80, %s81
      %p95 = scmp.eq.s32.totalorder %s26, 1
      %p96 = por %p94, %p95
      %p98 = scmp.ne.s32.totalorder %s81, %s97
      %p99 = scmp.eq.s32.totalorder %s26, 0
      %p100 = por %p98, %p99
      %s101 = ssub.s32 %s20, %s27
      %p102 = scmp.eq.s32.totalorder %s101, 0
      %s104 = sadd.s32 %s103, 1
      %s105 = scalar_select %p102, %s103, %s104
      %p108 = pneg %p102
      %p109 = scmp.eq.s32.totalorder %s20, 1
      %p110 = por %p108, %p109
      %p111 = scmp.ne.s32.totalorder %s103, %s106
      %p112 = scmp.eq.s32.totalorder %s20, 0
      %p113 = por %p111, %p112
      %p114 = scmp.ne.s32.totalorder %s103, %s106
      %p115 = scmp.eq.s32.totalorder %s25, 1
      %p116 = por %p114, %p115
      %p117 = scmp.ne.s32.totalorder %s106, %s107
      %p118 = scmp.eq.s32.totalorder %s25, 0
      %p119 = por %p117, %p118
      %p120 = scmp.ne.s32.totalorder %s106, %s107
      %p121 = scmp.eq.s32.totalorder %s26, 1
      %p122 = por %p120, %p121
      %p124 = scmp.ne.s32.totalorder %s107, %s123
      %p125 = scmp.eq.s32.totalorder %s26, 0
      %p126 = por %p124, %p125
      %p127 = scmp.le.s32.totalorder 1, %s20
      %p128 = scmp.lt.s32.totalorder %s20, 3
      %p129 = pnand %p127, %p128
      %p130 = pneg %p129
      // Predicated region
      $region9: #{tpu_custom_call.1} parent=5 // pred_check
        _
      $region10: #{tpu_custom_call.1} parent=5 // pred_check_branch
        %132 = sbr.rel (%p129) target = $region12
      $region11: #{tpu_custom_call.1} parent=5 // pred_region
        %s133 = ssub.s32 %s20, 1
        // Predicated region
        $region13: #{tpu_custom_call.1} parent=11 // pred_check
          %p134 = pneg %p67
        $region14: #{tpu_custom_call.1} parent=11 // pred_check_branch
          %136 = sbr.rel (%p134) target = $region16
        $region15: #{tpu_custom_call.1} parent=11 // pred_region
          %s138 = ssub.s32 256, 256
          %139 = vsyncadd [#allocation6], %s138
          %s140 = sshll.u32 [#allocation5], 4
          %s141 = int_to_ptr.vmem [resolvable:$true] %s140
          %146 = dma.hbm_to_vmem [thread:$0]  %s1, 256, %s141, [#allocation6], 64, 64, 4
        $region16: #{tpu_custom_call.1} parent=11 // pred_fallthru
          _
      $region12: #{tpu_custom_call.1} parent=5 // pred_fallthru
        _
      %p147 = scmp.lt.s32.totalorder %s20, 2
      // Predicated region
      $region17: #{tpu_custom_call.1} parent=5 // pred_check
        %p148 = pneg %p147
      $region18: #{tpu_custom_call.1} parent=5 // pred_check_branch
        %150 = sbr.rel (%p148) target = $region20
      $region19: #{tpu_custom_call.1} parent=5 // pred_region
        // Predicated region
        $region21: #{tpu_custom_call.1} parent=19 // pred_check
          %p151 = pneg %p40
        $region22: #{tpu_custom_call.1} parent=19 // pred_check_branch
          %153 = sbr.rel (%p151) target = $region24
        $region23: #{tpu_custom_call.1} parent=19 // pred_region
          %s154 = sand.u32 %s30, 1
          %s155 = scalar_lea.sflag [#allocation3], %s154
          %s156 = sand.u32 %s30, 1
          %s157 = smul.addr %s156, 8
          %s158 = scalar_lea.vmem [#allocation2], %s157
          %s160 = ssub.s32 128, 128
          %161 = vsyncadd %s155, %s160
          %s162 = smul.addr %s20, 128
          %s163 = scalar_lea.hbm %s0, %s162
          %s165 = sshll.u32 %s158, 4
          %s166 = int_to_ptr.vmem [resolvable:$true] %s165
          %168 = dma.hbm_to_vmem [thread:$0]  %s163, 128, %s166, %s155
        $region24: #{tpu_custom_call.1} parent=19 // pred_fallthru
          _
      $region20: #{tpu_custom_call.1} parent=5 // pred_fallthru
        _
      %p169 = scmp.le.s32.totalorder 1, %s20
      %p170 = scmp.lt.s32.totalorder %s20, 3
      %p171 = pnand %p169, %p170
      %p172 = pneg %p171
      // Predicated region
      $region25: #{tpu_custom_call.1} parent=5 // pred_check
        _
      $region26: #{tpu_custom_call.1} parent=5 // pred_check_branch
        %174 = sbr.rel (%p171) target = $region28
      $region27: #{tpu_custom_call.1} parent=5 // pred_region
        %s175 = ssub.s32 %s20, 1
        %s176 = sand.u32 %s33, 1
        %s177 = scalar_lea.sflag [#allocation3], %s176
        %s178 = sand.u32 %s33, 1
        %s179 = smul.addr %s178, 8
        %s180 = scalar_lea.vmem [#allocation2], %s179
        // Predicated region
        $region29: #{tpu_custom_call.1} parent=27 // pred_check
          %p181 = pneg %p46
        $region30: #{tpu_custom_call.1} parent=27 // pred_check_branch
          %183 = sbr.rel (%p181) target = $region32
        $region31: #{tpu_custom_call.1} parent=27 // pred_region
          %184 = dma.done %s177, 128
        $region32: #{tpu_custom_call.1} parent=27 // pred_fallthru
          _
        // Predicated region
        $region33: #{tpu_custom_call.1} parent=27 // pred_check
          %p185 = pneg %p67
        $region34: #{tpu_custom_call.1} parent=27 // pred_check_branch
          %187 = sbr.rel (%p185) target = $region36
        $region35: #{tpu_custom_call.1} parent=27 // pred_region
          %188 = dma.done [#allocation6], 256
        $region36: #{tpu_custom_call.1} parent=27 // pred_fallthru
          _
        %s189 = sand.u32 %s33, 1
        %s190 = scalar_lea.sflag [#allocation3], %s189
        %s191 = sand.u32 %s33, 1
        %s192 = smul.addr %s191, 8
        %s193 = scalar_lea.vmem [#allocation2], %s192
        %p194 = pneg %p46
        %p195 = pneg %p43
        %p196 = pneg %p67
        %p197 = pneg %p64
        %p198 = pneg %p93
        %p199 = pneg %p90
        %s200 = sand.u32 %s80, 1
        %s201 = scalar_lea.sflag [#allocation4], %s200
        %s202 = sand.u32 %s80, 1
        %s203 = smul.addr %s202, 8
        %s204 = scalar_lea.vmem [#allocation7], %s203
        %p205 = pneg %p119
        %p206 = pneg %p116
        %s207 = sand.u32 %s106, 1
        %s208 = scalar_lea.sflag [#allocation9], %s207
        %s209 = sand.u32 %s106, 1
        %s210 = smul.addr %s209, 8
        %s211 = scalar_lea.vmem [#allocation8], %s210
        %v213 = vld [vmem:[%s180] sm:$0xff]
        %v214 = vpack.c.bf16 %v213, %v213
        %v215 = vld [vmem:[#allocation5] sm:$0xf]
        %v216 = vld [vmem:[#allocation5 + $0x4] sm:$0xf]
        %v217 = vld [vmem:[#allocation5 + $0x8] sm:$0xf]
        %v218 = vld [vmem:[#allocation5 + $0xc] sm:$0xf]
        %v223 = vunpack.c.l.b16 %v215
        %v224 = vunpack.c.l.b16 %v216
        %v225 = vunpack.c.l.b16 %v217
        %v226 = vunpack.c.l.b16 %v218
        %v227 = vpack.c.b16 %v224, %v223
        %v228 = vpack.c.b16 %v226, %v225
        %vm231 = vcmask 261120
        %v233 = vsel %vm231, %v214, 0
        %235 = vmatprep.subr.bf16.mxu0 0
        %236 = vmatpush1.bf16.msra.mxu0 %v227
        %237 = vmatprep.subr.bf16.mxu0 0
        %238 = vmatpush1.bf16.msra.mxu0 %v228
        %239 = vmatprep.subr.bf16.mxu0 0
        %240 = vmatpush1.bf16.msra.mxu0 0
        %241 = vmatprep.subr.bf16.mxu0 0
        %242 = vmatpush1.bf16.msra.mxu0 0
        %243 = vmatprep.subr.bf16.mxu0 0
        %244 = vmatpush1.bf16.msra.mxu0 0
        %245 = vmatprep.subr.bf16.mxu0 0
        %246 = vmatpush1.bf16.msra.mxu0 0
        %247 = vmatprep.subr.bf16.mxu0 0
        %248 = vmatpush1.bf16.msra.mxu0 0
        %249 = vmatprep.subr.bf16.mxu0 0
        %250 = vmatpush1.bf16.msra.mxu0 0
        %251 = vmatprep.subr.bf16.mxu0 0
        %252 = vmatpush1.bf16.msra.mxu0 0
        %253 = vmatprep.subr.bf16.mxu0 0
        %254 = vmatpush1.bf16.msra.mxu0 0
        %255 = vmatprep.subr.bf16.mxu0 0
        %256 = vmatpush1.bf16.msra.mxu0 0
        %257 = vmatprep.subr.bf16.mxu0 0
        %258 = vmatpush1.bf16.msra.mxu0 0
        %259 = vmatprep.subr.bf16.mxu0 0
        %260 = vmatpush1.bf16.msra.mxu0 0
        %261 = vmatprep.subr.bf16.mxu0 0
        %262 = vmatpush1.bf16.msra.mxu0 0
        %263 = vmatprep.subr.bf16.mxu0 0
        %264 = vmatpush1.bf16.msra.mxu0 0
        %265 = vmatprep.subr.bf16.mxu0 0
        %266 = vmatpush1.bf16.msra.mxu0 0
        %267 = vmatprep.mubr.bf16.mxu0 0
        %268 = vmatmul.mubr.bf16.gmra.mrb[0].mxu0 %v233
        %v269 = vpop.f32.mrb[0].mxu0
        %v270 = vadd.f32 0.0, %v269
        %v271 = vpop.f32.mrb[0].mxu0
        %v272 = vpop.f32.mrb[0].mxu0
        %v273 = vpop.f32.mrb[0].mxu0
        %274 = vdwg.mxu0
        %275 = vst [vmem:[%s204] sm:$0xff] %v270
        %v276 = vsel %vm231, %v213, 0.0
        %277 = vadd.xlane.f32.xlu0 %v276
        %v278 = vpop.xlane.xlu0 %277
        %v279 = vrot.slane %v278, 4
        %v280 = vadd.f32 %v278, %v279
        %v281 = vrot.slane %v280, 2
        %v282 = vadd.f32 %v280, %v281
        %v283 = vrot.slane %v282, 1
        %v284 = vadd.f32 %v282, %v283
        %s285 = vtos %v284
        %v286 = vrcp.pop 256.0
        %s287 = vtos %v286
        %s288 = smul.f32 %s285, %s287
        %v289 = vstv %s288
        %v290 = vsub.f32 %v213, %v289
        %v291 = vmul.f32 %v290, %v290
        %v292 = vsel %vm231, %v291, 0.0
        %293 = vadd.xlane.f32.xlu0 %v292
        %v294 = vpop.xlane.xlu0 %293
        %v295 = vrot.slane %v294, 4
        %v296 = vadd.f32 %v294, %v295
        %v297 = vrot.slane %v296, 2
        %v298 = vadd.f32 %v296, %v297
        %v299 = vrot.slane %v298, 1
        %v300 = vadd.f32 %v298, %v299
        %s301 = vtos %v300
        %v302 = vlaneseq
        %v303 = vand.u32 %v302, 127
        %vm304 = vcmp.eq.s32.totalorder %v303, 0
        %vm305 = vcmp.eq.s32.totalorder %v303, 1
        %v306 = vstv %s301
        %v307 = vsel %vm305, %v306, 256.0
        %v308 = vstv %s285
        %v309 = vsel %vm304, %v308, %v307
        %310 = vst [vmem:[%s211] sm:$0xff] %v309
        %s311 = sand.u32 %s80, 1
        %s312 = scalar_lea.sflag [#allocation4], %s311
        %s313 = sand.u32 %s80, 1
        %s314 = smul.addr %s313, 8
        %s315 = scalar_lea.vmem [#allocation7], %s314
        %s316 = sand.u32 %s106, 1
        %s317 = scalar_lea.sflag [#allocation9], %s316
        %s318 = sand.u32 %s106, 1
        %s319 = smul.addr %s318, 8
        %s320 = scalar_lea.vmem [#allocation8], %s319
        // Predicated region
        $region37: #{tpu_custom_call.1} parent=27 // pred_check
          %p321 = pneg %p90
        $region38: #{tpu_custom_call.1} parent=27 // pred_check_branch
          %323 = sbr.rel (%p321) target = $region40
        $region39: #{tpu_custom_call.1} parent=27 // pred_region
          %s325 = ssub.s32 128, 128
          %326 = vsyncadd %s312, %s325
          %s327 = smul.addr %s25, 128
          %s328 = scalar_lea.hbm %s2, %s327
          %s330 = sshll.u32 %s315, 4
          %s331 = int_to_ptr.vmem [resolvable:$true] %s330
          %333 = dma.vmem_to_hbm [thread:$0]  %s331, 128, %s328, %s312
        $region40: #{tpu_custom_call.1} parent=27 // pred_fallthru
          _
        // Predicated region
        $region41: #{tpu_custom_call.1} parent=27 // pred_check
          %p334 = pneg %p116
        $region42: #{tpu_custom_call.1} parent=27 // pred_check_branch
          %336 = sbr.rel (%p334) target = $region44
        $region43: #{tpu_custom_call.1} parent=27 // pred_region
          %s338 = ssub.s32 128, 128
          %339 = vsyncadd %s317, %s338
          %s340 = smul.addr %s25, 128
          %s341 = scalar_lea.hbm %s3, %s340
          %s343 = sshll.u32 %s320, 4
          %s344 = int_to_ptr.vmem [resolvable:$true] %s343
          %346 = dma.vmem_to_hbm [thread:$0]  %s344, 128, %s341, %s317
        $region44: #{tpu_custom_call.1} parent=27 // pred_fallthru
          _
      $region28: #{tpu_custom_call.1} parent=5 // pred_fallthru
        _
      %p347 = scmp.le.s32.totalorder 2, %s20
      // Predicated region
      $region45: #{tpu_custom_call.1} parent=5 // pred_check
        %p348 = pneg %p347
      $region46: #{tpu_custom_call.1} parent=5 // pred_check_branch
        %350 = sbr.rel (%p348) target = $region48
      $region47: #{tpu_custom_call.1} parent=5 // pred_region
        %s351 = ssub.s32 %s20, 2
        // Predicated region
        $region49: #{tpu_custom_call.1} parent=47 // pred_check
          %p352 = pneg %p96
        $region50: #{tpu_custom_call.1} parent=47 // pred_check_branch
          %354 = sbr.rel (%p352) target = $region52
        $region51: #{tpu_custom_call.1} parent=47 // pred_region
          %s355 = sand.u32 %s81, 1
          %s356 = scalar_lea.sflag [#allocation4], %s355
          %s357 = sand.u32 %s81, 1
          %s358 = smul.addr %s357, 8
          %s359 = scalar_lea.vmem [#allocation7], %s358
          %360 = dma.done %s356, 128
        $region52: #{tpu_custom_call.1} parent=47 // pred_fallthru
          _
        // Predicated region
        $region53: #{tpu_custom_call.1} parent=47 // pred_check
          %p361 = pneg %p122
        $region54: #{tpu_custom_call.1} parent=47 // pred_check_branch
          %363 = sbr.rel (%p361) target = $region56
        $region55: #{tpu_custom_call.1} parent=47 // pred_region
          %s364 = sand.u32 %s107, 1
          %s365 = scalar_lea.sflag [#allocation9], %s364
          %s366 = sand.u32 %s107, 1
          %s367 = smul.addr %s366, 8
          %s368 = scalar_lea.vmem [#allocation8], %s367
          %369 = dma.done %s365, 128
        $region56: #{tpu_custom_call.1} parent=47 // pred_fallthru
          _
      $region48: #{tpu_custom_call.1} parent=5 // pred_fallthru
        _
    $region6: #{tpu_custom_call.1} parent=1 // loop_footer
      %s24 = sadd.s32 1, %s20
    $region7: #{tpu_custom_call.1} parent=1 // loop_footer_branch
      %19 = sbr.rel target = $region3
    $region8: #{tpu_custom_call.1} parent=1 // loop_exit
      _
    %370 = vsyncpa [#allocation3], 1
    %s371 = scalar_lea.sflag [#allocation3], 1
    %372 = vsyncpa %s371, 1
    %373 = vsyncpa [#allocation6], 1
    %374 = vsyncpa [#allocation4], 1
    %s375 = scalar_lea.sflag [#allocation4], 1
    %376 = vsyncpa %s375, 1
    %377 = vsyncpa [#allocation9], 1
    %s378 = scalar_lea.sflag [#allocation9], 1
    %379 = vsyncpa %s378, 1

</llo_original>
